<compile_context>
chip_gen: v5e
topology: v5e:2x2
jax: 0.10.0
libtpu: 0.0.40
codegen_flags: <defaults>
</compile_context>

<pallas_src>
import jax
import jax.numpy as jnp
from jax.experimental import pallas as pl
from jax.experimental.pallas import tpu as pltpu


_LANE = 128
_SUBLANE = 8
_TARGET_BLOCK_BYTES = 2 * 2**20  # ~2 MiB per in/out block


def _ceil_div(a, b):
    return -(-a // b)


def _chip_defaults():
    """(small_c_max, vmem_limit_bytes) per TPU generation.

    VPU-vs-MXU crossover ~ where 2*C VALU element-ops stop being free under the
    HBM roofline: ~20 on v5e, ~12 on v6e, ~8 per-TC on v7x.  Unknown chips fall
    back to the most conservative (v7x-like) setting, which is still correct.
    """
    kind = ""
    try:
        kind = jax.devices()[0].device_kind.lower()
    except Exception:  # noqa: BLE001
        pass
    if "v4" in kind or "v5" in kind:
        return 20, 96 * 2**20
    if "v6" in kind:
        return 12, 96 * 2**20
    # v7x / unknown: 64 MiB VMEM per TensorCore -> stay well under it.
    return 8, 48 * 2**20


# ---------------------------------------------------------------------------
# Kernels
# ---------------------------------------------------------------------------

def _mxu_kernel(x_ref, w_ref, b_ref, o_ref):
    """out = (W^T + I) @ x + b on the MXU.  x_ref: (1, C, hw_tile)."""
    x = x_ref[0]                                                    # (C, hw_tile)
    y = jnp.dot(w_ref[...], x, preferred_element_type=jnp.float32)  # f32 acc
    o_ref[0] = (y + b_ref[...]).astype(o_ref.dtype)


def _make_vpu_kernel(C):
    """Tiny-C path: unrolled scalar(SMEM) x plane(VMEM) FMAs on the VPU.

    Works for both layouts because the channel axis is always axis 1:
      4D block (n_tile, C, s_tile, 128)  -- minor dims spatial, fully dense
      3D block (1, C, hw_tile)           -- fallback when HW % 128 != 0
    Residual + bias are already folded into (w, b); accumulate in f32 and
    store each output-channel plane directly (no concatenate, no row temps).
    """
    def kernel(x_ref, w_ref, b_ref, o_ref):
        for co in range(C):
            acc = w_ref[co * C] * x_ref[:, 0].astype(jnp.float32)
            for ci in range(1, C):
                acc = acc + w_ref[co * C + ci] * x_ref[:, ci].astype(jnp.float32)
            o_ref[:, co] = (acc + b_ref[co]).astype(o_ref.dtype)
    return kernel


# ---------------------------------------------------------------------------
# Tile selection
# ---------------------------------------------------------------------------

def _pick_tiles_4d(N, C, S, itemsize):
    """(n_tile, s_tile) for the (N, C, S, 128) layout, ~2 MiB per block."""
    plane_bytes = C * _LANE * itemsize          # bytes per unit of s_tile, one image
    image_bytes = plane_bytes * S
    if image_bytes >= _TARGET_BLOCK_BYTES:
        s_tile = max(1, _TARGET_BLOCK_BYTES // plane_bytes)
        if s_tile >= S:
            return 1, S
        s_tile = max(_SUBLANE, (s_tile // _SUBLANE) * _SUBLANE)
        n_steps = _ceil_div(S, s_tile)          # balance block sizes (no tiny tail)
        s_tile = min(S, _ceil_div(_ceil_div(S, n_steps), _SUBLANE) * _SUBLANE)
        return 1, s_tile
    # Whole image is tiny: batch images per block to amortize grid-step overhead,
    # but keep >= ~4 steps along N when possible so both v7x TCs get work.
    n_tile = max(1, _TARGET_BLOCK_BYTES // image_bytes)
    if N >= 4:
        n_tile = min(n_tile, max(1, N // 4))
    return min(N, n_tile), S


def _pick_hw_tile_3d(HW, C, itemsize):
    """hw_tile for the (N, C, HW) layout: 128-multiple, ~2 MiB, balanced."""
    col_bytes = C * itemsize
    hw_tile = max(1, _TARGET_BLOCK_BYTES // col_bytes)
    if hw_tile >= HW:
        return HW
    hw_tile = max(_LANE, (hw_tile // _LANE) * _LANE)
    n_steps = _ceil_div(HW, hw_tile)
    # 128-multiple tiles even when HW isn't: the ragged tail block is masked.
    return min(HW, _ceil_div(_ceil_div(HW, n_steps), _LANE) * _LANE)


# ---------------------------------------------------------------------------
# Wrapper
# ---------------------------------------------------------------------------

def custom_residual(x_nchw, w, b, *, donate_x=False):
    """out = x + conv1x1(x; w, b), NCHW in / NCHW out.

    x_nchw: (N, C, H, W);  w: (C_in, C_out) == (C, C);  b: (C,).
    Set donate_x=True only if the caller will not reuse x (aliases x's HBM
    buffer to the output).
    """
    N, C, H, W = x_nchw.shape
    HW = H * W
    itemsize = jnp.dtype(x_nchw.dtype).itemsize

    small_c_max, vmem_limit = _chip_defaults()

    # Fold the residual into the channel mix (f32, exact enough vs f32 ref).
    w_k = w.astype(jnp.float32).T + jnp.eye(C, dtype=jnp.float32)   # (C_out, C_in)

    use_vpu = C < small_c_max
    use_4d = use_vpu and (HW % _LANE == 0)

    if use_4d:
        S = HW // _LANE
        x_in = x_nchw.reshape(N, C, S, _LANE)                       # free reshape
        n_tile, s_tile = _pick_tiles_4d(N, C, S, itemsize)
        grid = (pl.cdiv(N, n_tile), pl.cdiv(S, s_tile))
        blk = (n_tile, C, s_tile, _LANE)
        x_spec = pl.BlockSpec(blk, lambda n, t: (n, 0, t, 0))
        o_spec = pl.BlockSpec(blk, lambda n, t: (n, 0, t, 0))
        out_shape = jax.ShapeDtypeStruct((N, C, S, _LANE), x_nchw.dtype)
    else:
        # MXU path, or VPU fallback when HW isn't a multiple of 128.
        x_in = x_nchw.reshape(N, C, HW)                             # free reshape
        hw_tile = _pick_hw_tile_3d(HW, C, itemsize)
        grid = (N, pl.cdiv(HW, hw_tile))
        blk = (1, C, hw_tile)
        x_spec = pl.BlockSpec(blk, lambda n, t: (n, 0, t))
        o_spec = pl.BlockSpec(blk, lambda n, t: (n, 0, t))
        out_shape = jax.ShapeDtypeStruct((N, C, HW), x_nchw.dtype)

    if use_vpu:
        kernel = _make_vpu_kernel(C)
        w_arg = w_k.reshape(-1)                 # (C*C,) f32 scalars, flat -> tiny SMEM
        b_arg = b.astype(jnp.float32)           # (C,)
        w_spec = pl.BlockSpec(memory_space=pltpu.MemorySpace.SMEM)
        b_spec = pl.BlockSpec(memory_space=pltpu.MemorySpace.SMEM)
    else:
        kernel = _mxu_kernel
        w_arg = w_k                             # (C, C) f32, resident in VMEM
        b_arg = b.astype(jnp.float32).reshape(C, 1)
        w_spec = pl.BlockSpec((C, C), lambda n, t: (0, 0))
        b_spec = pl.BlockSpec((C, 1), lambda n, t: (0, 0))

    out = pl.pallas_call(
        kernel,
        out_shape=out_shape,
        grid=grid,
        in_specs=[x_spec, w_spec, b_spec],
        out_specs=o_spec,
        input_output_aliases=({0: 0} if donate_x else {}),
        compiler_params=pltpu.CompilerParams(
            dimension_semantics=("parallel", "parallel"),
            vmem_limit_bytes=vmem_limit,
        ),
    )(x_in, w_arg, b_arg)

    return out.reshape(N, C, H, W)


if __name__ == "__main__":
    key = jax.random.PRNGKey(0)
    kx, kw, kb = jax.random.split(key, 3)

    # Primary (module-consistent small shape): tiny-C VPU path, 4D layout.
    N, C, H, W = 2, 4, 16, 16
    x = jax.random.normal(kx, (N, C, H, W), dtype=jnp.float32)
    w = jax.random.normal(kw, (C, C), dtype=jnp.float32) * 0.1
    b = jax.random.normal(kb, (C,), dtype=jnp.float32) * 0.1

    out = jax.block_until_ready(custom_residual(x, w, b))
    # Pure-JAX reference: out = x + fn(x), fn = 1x1 conv (channel mix + bias).
    ref = x + jnp.einsum("nchw,cd->ndhw", x, w) + b[None, :, None, None]
    assert out.shape == x.shape and out.dtype == x.dtype
    assert jnp.allclose(out, ref, atol=1e-4, rtol=1e-5), float(
        jnp.max(jnp.abs(out - ref)))

    # MXU path (C above every generation's VPU/MXU crossover).
    kx2, kw2, kb2 = jax.random.split(jax.random.PRNGKey(1), 3)
    C2 = 32
    x2 = jax.random.normal(kx2, (2, C2, 16, 16), dtype=jnp.float32)
    w2 = jax.random.normal(kw2, (C2, C2), dtype=jnp.float32) * 0.1
    b2 = jax.random.normal(kb2, (C2,), dtype=jnp.float32) * 0.1
    out2 = jax.block_until_ready(custom_residual(x2, w2, b2))
    ref2 = x2 + jnp.einsum("nchw,cd->ndhw", x2, w2) + b2[None, :, None, None]
    assert jnp.allclose(out2, ref2, atol=1e-4, rtol=1e-5), float(
        jnp.max(jnp.abs(out2 - ref2)))

    # bf16 I/O on the tiny-C path (f32 accumulation inside the kernel).
    xb = x.astype(jnp.bfloat16)
    outb = jax.block_until_ready(custom_residual(xb, w, b))
    xbf = xb.astype(jnp.float32)
    refb = xbf + jnp.einsum("nchw,cd->ndhw", xbf, w) + b[None, :, None, None]
    assert outb.dtype == jnp.bfloat16
    assert jnp.allclose(outb.astype(jnp.float32), refb, atol=5e-2), float(
        jnp.max(jnp.abs(outb.astype(jnp.float32) - refb)))

    print("KERNEL_OK")
</pallas_src>

<mosaic_0001>
module attributes {stable_mosaic.version = 11 : i64} {
  func.func @kernel(%arg0: i32, %arg1: i32, %arg2: memref<2x4x2x128xf32, #tpu.memory_space<vmem>>, %arg3: memref<16xf32, #tpu.memory_space<smem>>, %arg4: memref<4xf32, #tpu.memory_space<smem>>, %arg5: memref<2x4x2x128xf32, #tpu.memory_space<vmem>>) attributes {dimension_semantics = [#tpu.dimension_semantics<parallel>, #tpu.dimension_semantics<parallel>], iteration_bounds = array<i64: 1, 1>, scalar_prefetch = 0 : i64, scratch_operands = 0 : i64, tpu.core_type = #tpu.core_type<tc>, window_params = [{transform_indices = @transform_0, window_bounds = array<i64: 2, 4, 2, 128>}, {transform_indices = @transform_1, window_bounds = array<i64: 16>}, {transform_indices = @transform_2, window_bounds = array<i64: 4>}, {transform_indices = @transform_3, window_bounds = array<i64: 2, 4, 2, 128>}]} {
    %c0 = arith.constant 0 : index
    %0 = memref.load %arg3[%c0] : memref<16xf32, #tpu.memory_space<smem>>
    %c0_0 = arith.constant 0 : index
    %c0_1 = arith.constant 0 : index
    %c0_2 = arith.constant 0 : index
    %c0_3 = arith.constant 0 : index
    %1 = vector.load %arg2[%c0_0, %c0_1, %c0_2, %c0_3] : memref<2x4x2x128xf32, #tpu.memory_space<vmem>>, vector<2x1x2x128xf32>
    %2 = vector.shape_cast %1 : vector<2x1x2x128xf32> to vector<2x2x128xf32>
    %3 = vector.broadcast %0 : f32 to vector<2x2x128xf32>
    %4 = arith.mulf %3, %2 : vector<2x2x128xf32>
    %c1 = arith.constant 1 : index
    %5 = memref.load %arg3[%c1] : memref<16xf32, #tpu.memory_space<smem>>
    %c0_4 = arith.constant 0 : index
    %c1_5 = arith.constant 1 : index
    %c0_6 = arith.constant 0 : index
    %c0_7 = arith.constant 0 : index
    %6 = vector.load %arg2[%c0_4, %c1_5, %c0_6, %c0_7] : memref<2x4x2x128xf32, #tpu.memory_space<vmem>>, vector<2x1x2x128xf32>
    %7 = vector.shape_cast %6 : vector<2x1x2x128xf32> to vector<2x2x128xf32>
    %8 = vector.broadcast %5 : f32 to vector<2x2x128xf32>
    %9 = arith.mulf %8, %7 : vector<2x2x128xf32>
    %10 = arith.addf %4, %9 : vector<2x2x128xf32>
    %c2 = arith.constant 2 : index
    %11 = memref.load %arg3[%c2] : memref<16xf32, #tpu.memory_space<smem>>
    %c0_8 = arith.constant 0 : index
    %c2_9 = arith.constant 2 : index
    %c0_10 = arith.constant 0 : index
    %c0_11 = arith.constant 0 : index
    %12 = vector.load %arg2[%c0_8, %c2_9, %c0_10, %c0_11] : memref<2x4x2x128xf32, #tpu.memory_space<vmem>>, vector<2x1x2x128xf32>
    %13 = vector.shape_cast %12 : vector<2x1x2x128xf32> to vector<2x2x128xf32>
    %14 = vector.broadcast %11 : f32 to vector<2x2x128xf32>
    %15 = arith.mulf %14, %13 : vector<2x2x128xf32>
    %16 = arith.addf %10, %15 : vector<2x2x128xf32>
    %c3 = arith.constant 3 : index
    %17 = memref.load %arg3[%c3] : memref<16xf32, #tpu.memory_space<smem>>
    %c0_12 = arith.constant 0 : index
    %c3_13 = arith.constant 3 : index
    %c0_14 = arith.constant 0 : index
    %c0_15 = arith.constant 0 : index
    %18 = vector.load %arg2[%c0_12, %c3_13, %c0_14, %c0_15] : memref<2x4x2x128xf32, #tpu.memory_space<vmem>>, vector<2x1x2x128xf32>
    %19 = vector.shape_cast %18 : vector<2x1x2x128xf32> to vector<2x2x128xf32>
    %20 = vector.broadcast %17 : f32 to vector<2x2x128xf32>
    %21 = arith.mulf %20, %19 : vector<2x2x128xf32>
    %22 = arith.addf %16, %21 : vector<2x2x128xf32>
    %c0_16 = arith.constant 0 : index
    %23 = memref.load %arg4[%c0_16] : memref<4xf32, #tpu.memory_space<smem>>
    %24 = vector.broadcast %23 : f32 to vector<2x2x128xf32>
    %25 = arith.addf %22, %24 : vector<2x2x128xf32>
    %c0_17 = arith.constant 0 : index
    %c0_18 = arith.constant 0 : index
    %c0_19 = arith.constant 0 : index
    %c0_20 = arith.constant 0 : index
    %26 = vector.load %arg5[%c0_17, %c0_18, %c0_19, %c0_20] : memref<2x4x2x128xf32, #tpu.memory_space<vmem>>, vector<2x1x2x128xf32>
    %27 = vector.shape_cast %26 : vector<2x1x2x128xf32> to vector<2x2x128xf32>
    %28 = vector.shape_cast %25 : vector<2x2x128xf32> to vector<2x1x2x128xf32>
    tpu.vector_store %arg5[%c0_17, %c0_18, %c0_19, %c0_20], %28 {strides = array<i32>} : memref<2x4x2x128xf32, #tpu.memory_space<vmem>>, vector<2x1x2x128xf32>,
    %c4 = arith.constant 4 : index
    %29 = memref.load %arg3[%c4] : memref<16xf32, #tpu.memory_space<smem>>
    %c0_21 = arith.constant 0 : index
    %c0_22 = arith.constant 0 : index
    %c0_23 = arith.constant 0 : index
    %c0_24 = arith.constant 0 : index
    %30 = vector.load %arg2[%c0_21, %c0_22, %c0_23, %c0_24] : memref<2x4x2x128xf32, #tpu.memory_space<vmem>>, vector<2x1x2x128xf32>
    %31 = vector.shape_cast %30 : vector<2x1x2x128xf32> to vector<2x2x128xf32>
    %32 = vector.broadcast %29 : f32 to vector<2x2x128xf32>
    %33 = arith.mulf %32, %31 : vector<2x2x128xf32>
    %c5 = arith.constant 5 : index
    %34 = memref.load %arg3[%c5] : memref<16xf32, #tpu.memory_space<smem>>
    %c0_25 = arith.constant 0 : index
    %c1_26 = arith.constant 1 : index
    %c0_27 = arith.constant 0 : index
    %c0_28 = arith.constant 0 : index
    %35 = vector.load %arg2[%c0_25, %c1_26, %c0_27, %c0_28] : memref<2x4x2x128xf32, #tpu.memory_space<vmem>>, vector<2x1x2x128xf32>
    %36 = vector.shape_cast %35 : vector<2x1x2x128xf32> to vector<2x2x128xf32>
    %37 = vector.broadcast %34 : f32 to vector<2x2x128xf32>
    %38 = arith.mulf %37, %36 : vector<2x2x128xf32>
    %39 = arith.addf %33, %38 : vector<2x2x128xf32>
    %c6 = arith.constant 6 : index
    %40 = memref.load %arg3[%c6] : memref<16xf32, #tpu.memory_space<smem>>
    %c0_29 = arith.constant 0 : index
    %c2_30 = arith.constant 2 : index
    %c0_31 = arith.constant 0 : index
    %c0_32 = arith.constant 0 : index
    %41 = vector.load %arg2[%c0_29, %c2_30, %c0_31, %c0_32] : memref<2x4x2x128xf32, #tpu.memory_space<vmem>>, vector<2x1x2x128xf32>
    %42 = vector.shape_cast %41 : vector<2x1x2x128xf32> to vector<2x2x128xf32>
    %43 = vector.broadcast %40 : f32 to vector<2x2x128xf32>
    %44 = arith.mulf %43, %42 : vector<2x2x128xf32>
    %45 = arith.addf %39, %44 : vector<2x2x128xf32>
    %c7 = arith.constant 7 : index
    %46 = memref.load %arg3[%c7] : memref<16xf32, #tpu.memory_space<smem>>
    %c0_33 = arith.constant 0 : index
    %c3_34 = arith.constant 3 : index
    %c0_35 = arith.constant 0 : index
    %c0_36 = arith.constant 0 : index
    %47 = vector.load %arg2[%c0_33, %c3_34, %c0_35, %c0_36] : memref<2x4x2x128xf32, #tpu.memory_space<vmem>>, vector<2x1x2x128xf32>
    %48 = vector.shape_cast %47 : vector<2x1x2x128xf32> to vector<2x2x128xf32>
    %49 = vector.broadcast %46 : f32 to vector<2x2x128xf32>
    %50 = arith.mulf %49, %48 : vector<2x2x128xf32>
    %51 = arith.addf %45, %50 : vector<2x2x128xf32>
    %c1_37 = arith.constant 1 : index
    %52 = memref.load %arg4[%c1_37] : memref<4xf32, #tpu.memory_space<smem>>
    %53 = vector.broadcast %52 : f32 to vector<2x2x128xf32>
    %54 = arith.addf %51, %53 : vector<2x2x128xf32>
    %c0_38 = arith.constant 0 : index
    %c1_39 = arith.constant 1 : index
    %c0_40 = arith.constant 0 : index
    %c0_41 = arith.constant 0 : index
    %55 = vector.load %arg5[%c0_38, %c1_39, %c0_40, %c0_41] : memref<2x4x2x128xf32, #tpu.memory_space<vmem>>, vector<2x1x2x128xf32>
    %56 = vector.shape_cast %55 : vector<2x1x2x128xf32> to vector<2x2x128xf32>
    %57 = vector.shape_cast %54 : vector<2x2x128xf32> to vector<2x1x2x128xf32>
    tpu.vector_store %arg5[%c0_38, %c1_39, %c0_40, %c0_41], %57 {strides = array<i32>} : memref<2x4x2x128xf32, #tpu.memory_space<vmem>>, vector<2x1x2x128xf32>,
    %c8 = arith.constant 8 : index
    %58 = memref.load %arg3[%c8] : memref<16xf32, #tpu.memory_space<smem>>
    %c0_42 = arith.constant 0 : index
    %c0_43 = arith.constant 0 : index
    %c0_44 = arith.constant 0 : index
    %c0_45 = arith.constant 0 : index
    %59 = vector.load %arg2[%c0_42, %c0_43, %c0_44, %c0_45] : memref<2x4x2x128xf32, #tpu.memory_space<vmem>>, vector<2x1x2x128xf32>
    %60 = vector.shape_cast %59 : vector<2x1x2x128xf32> to vector<2x2x128xf32>
    %61 = vector.broadcast %58 : f32 to vector<2x2x128xf32>
    %62 = arith.mulf %61, %60 : vector<2x2x128xf32>
    %c9 = arith.constant 9 : index
    %63 = memref.load %arg3[%c9] : memref<16xf32, #tpu.memory_space<smem>>
    %c0_46 = arith.constant 0 : index
    %c1_47 = arith.constant 1 : index
    %c0_48 = arith.constant 0 : index
    %c0_49 = arith.constant 0 : index
    %64 = vector.load %arg2[%c0_46, %c1_47, %c0_48, %c0_49] : memref<2x4x2x128xf32, #tpu.memory_space<vmem>>, vector<2x1x2x128xf32>
    %65 = vector.shape_cast %64 : vector<2x1x2x128xf32> to vector<2x2x128xf32>
    %66 = vector.broadcast %63 : f32 to vector<2x2x128xf32>
    %67 = arith.mulf %66, %65 : vector<2x2x128xf32>
    %68 = arith.addf %62, %67 : vector<2x2x128xf32>
    %c10 = arith.constant 10 : index
    %69 = memref.load %arg3[%c10] : memref<16xf32, #tpu.memory_space<smem>>
    %c0_50 = arith.constant 0 : index
    %c2_51 = arith.constant 2 : index
    %c0_52 = arith.constant 0 : index
    %c0_53 = arith.constant 0 : index
    %70 = vector.load %arg2[%c0_50, %c2_51, %c0_52, %c0_53] : memref<2x4x2x128xf32, #tpu.memory_space<vmem>>, vector<2x1x2x128xf32>
    %71 = vector.shape_cast %70 : vector<2x1x2x128xf32> to vector<2x2x128xf32>
    %72 = vector.broadcast %69 : f32 to vector<2x2x128xf32>
    %73 = arith.mulf %72, %71 : vector<2x2x128xf32>
    %74 = arith.addf %68, %73 : vector<2x2x128xf32>
    %c11 = arith.constant 11 : index
    %75 = memref.load %arg3[%c11] : memref<16xf32, #tpu.memory_space<smem>>
    %c0_54 = arith.constant 0 : index
    %c3_55 = arith.constant 3 : index
    %c0_56 = arith.constant 0 : index
    %c0_57 = arith.constant 0 : index
    %76 = vector.load %arg2[%c0_54, %c3_55, %c0_56, %c0_57] : memref<2x4x2x128xf32, #tpu.memory_space<vmem>>, vector<2x1x2x128xf32>
    %77 = vector.shape_cast %76 : vector<2x1x2x128xf32> to vector<2x2x128xf32>
    %78 = vector.broadcast %75 : f32 to vector<2x2x128xf32>
    %79 = arith.mulf %78, %77 : vector<2x2x128xf32>
    %80 = arith.addf %74, %79 : vector<2x2x128xf32>
    %c2_58 = arith.constant 2 : index
    %81 = memref.load %arg4[%c2_58] : memref<4xf32, #tpu.memory_space<smem>>
    %82 = vector.broadcast %81 : f32 to vector<2x2x128xf32>
    %83 = arith.addf %80, %82 : vector<2x2x128xf32>
    %c0_59 = arith.constant 0 : index
    %c2_60 = arith.constant 2 : index
    %c0_61 = arith.constant 0 : index
    %c0_62 = arith.constant 0 : index
    %84 = vector.load %arg5[%c0_59, %c2_60, %c0_61, %c0_62] : memref<2x4x2x128xf32, #tpu.memory_space<vmem>>, vector<2x1x2x128xf32>
    %85 = vector.shape_cast %84 : vector<2x1x2x128xf32> to vector<2x2x128xf32>
    %86 = vector.shape_cast %83 : vector<2x2x128xf32> to vector<2x1x2x128xf32>
    tpu.vector_store %arg5[%c0_59, %c2_60, %c0_61, %c0_62], %86 {strides = array<i32>} : memref<2x4x2x128xf32, #tpu.memory_space<vmem>>, vector<2x1x2x128xf32>,
    %c12 = arith.constant 12 : index
    %87 = memref.load %arg3[%c12] : memref<16xf32, #tpu.memory_space<smem>>
    %c0_63 = arith.constant 0 : index
    %c0_64 = arith.constant 0 : index
    %c0_65 = arith.constant 0 : index
    %c0_66 = arith.constant 0 : index
    %88 = vector.load %arg2[%c0_63, %c0_64, %c0_65, %c0_66] : memref<2x4x2x128xf32, #tpu.memory_space<vmem>>, vector<2x1x2x128xf32>
    %89 = vector.shape_cast %88 : vector<2x1x2x128xf32> to vector<2x2x128xf32>
    %90 = vector.broadcast %87 : f32 to vector<2x2x128xf32>
    %91 = arith.mulf %90, %89 : vector<2x2x128xf32>
    %c13 = arith.constant 13 : index
    %92 = memref.load %arg3[%c13] : memref<16xf32, #tpu.memory_space<smem>>
    %c0_67 = arith.constant 0 : index
    %c1_68 = arith.constant 1 : index
    %c0_69 = arith.constant 0 : index
    %c0_70 = arith.constant 0 : index
    %93 = vector.load %arg2[%c0_67, %c1_68, %c0_69, %c0_70] : memref<2x4x2x128xf32, #tpu.memory_space<vmem>>, vector<2x1x2x128xf32>
    %94 = vector.shape_cast %93 : vector<2x1x2x128xf32> to vector<2x2x128xf32>
    %95 = vector.broadcast %92 : f32 to vector<2x2x128xf32>
    %96 = arith.mulf %95, %94 : vector<2x2x128xf32>
    %97 = arith.addf %91, %96 : vector<2x2x128xf32>
    %c14 = arith.constant 14 : index
    %98 = memref.load %arg3[%c14] : memref<16xf32, #tpu.memory_space<smem>>
    %c0_71 = arith.constant 0 : index
    %c2_72 = arith.constant 2 : index
    %c0_73 = arith.constant 0 : index
    %c0_74 = arith.constant 0 : index
    %99 = vector.load %arg2[%c0_71, %c2_72, %c0_73, %c0_74] : memref<2x4x2x128xf32, #tpu.memory_space<vmem>>, vector<2x1x2x128xf32>
    %100 = vector.shape_cast %99 : vector<2x1x2x128xf32> to vector<2x2x128xf32>
    %101 = vector.broadcast %98 : f32 to vector<2x2x128xf32>
    %102 = arith.mulf %101, %100 : vector<2x2x128xf32>
    %103 = arith.addf %97, %102 : vector<2x2x128xf32>
    %c15 = arith.constant 15 : index
    %104 = memref.load %arg3[%c15] : memref<16xf32, #tpu.memory_space<smem>>
    %c0_75 = arith.constant 0 : index
    %c3_76 = arith.constant 3 : index
    %c0_77 = arith.constant 0 : index
    %c0_78 = arith.constant 0 : index
    %105 = vector.load %arg2[%c0_75, %c3_76, %c0_77, %c0_78] : memref<2x4x2x128xf32, #tpu.memory_space<vmem>>, vector<2x1x2x128xf32>
    %106 = vector.shape_cast %105 : vector<2x1x2x128xf32> to vector<2x2x128xf32>
    %107 = vector.broadcast %104 : f32 to vector<2x2x128xf32>
    %108 = arith.mulf %107, %106 : vector<2x2x128xf32>
    %109 = arith.addf %103, %108 : vector<2x2x128xf32>
    %c3_79 = arith.constant 3 : index
    %110 = memref.load %arg4[%c3_79] : memref<4xf32, #tpu.memory_space<smem>>
    %111 = vector.broadcast %110 : f32 to vector<2x2x128xf32>
    %112 = arith.addf %109, %111 : vector<2x2x128xf32>
    %c0_80 = arith.constant 0 : index
    %c3_81 = arith.constant 3 : index
    %c0_82 = arith.constant 0 : index
    %c0_83 = arith.constant 0 : index
    %113 = vector.load %arg5[%c0_80, %c3_81, %c0_82, %c0_83] : memref<2x4x2x128xf32, #tpu.memory_space<vmem>>, vector<2x1x2x128xf32>
    %114 = vector.shape_cast %113 : vector<2x1x2x128xf32> to vector<2x2x128xf32>
    %115 = vector.shape_cast %112 : vector<2x2x128xf32> to vector<2x1x2x128xf32>
    tpu.vector_store %arg5[%c0_80, %c3_81, %c0_82, %c0_83], %115 {strides = array<i32>} : memref<2x4x2x128xf32, #tpu.memory_space<vmem>>, vector<2x1x2x128xf32>,
    return
  }
  func.func @transform_0(%arg0: i32, %arg1: i32) -> (i32, i32, i32, i32) {
    %c0_i32 = arith.constant 0 : i32
    %c0_i32_0 = arith.constant 0 : i32
    %c0_i32_1 = arith.constant 0 : i32
    return %arg0, %c0_i32, %arg1, %c0_i32_0 : i32, i32, i32, i32
  }
  func.func @transform_1(%arg0: i32, %arg1: i32) -> i32 {
    %c0_i32 = arith.constant 0 : i32
    %c0_i32_0 = arith.constant 0 : i32
    return %c0_i32 : i32
  }
  func.func @transform_2(%arg0: i32, %arg1: i32) -> i32 {
    %c0_i32 = arith.constant 0 : i32
    %c0_i32_0 = arith.constant 0 : i32
    return %c0_i32 : i32
  }
  func.func @transform_3(%arg0: i32, %arg1: i32) -> (i32, i32, i32, i32) {
    %c0_i32 = arith.constant 0 : i32
    %c0_i32_0 = arith.constant 0 : i32
    %c0_i32_1 = arith.constant 0 : i32
    return %arg0, %c0_i32, %arg1, %c0_i32_0 : i32, i32, i32, i32
  }
}

</mosaic_0001>

<llo_original>
// kernel: tpu_custom_call.1
$region0: #{tpu_custom_call.1}
  #allocation0 [shape = 'u32[]', space=smem, size = 0x4, offset = 0x4, fixed_abs, tag = 'smem constant byte address 0x4 - core index']
  #allocation1 [shape = 'u32[72,128]{1,0:T(1,128)}', space=vmem, size = 0x9000, scoped, tag = 'internal scratch']
  %s0 = inlined_call_operand.hbm [shape: f32[2,4,2,128], index: 0, kind: input, shape index: {}]
  %s1 = inlined_call_operand.hbm [shape: f32[16], index: 1, kind: input, shape index: {}]
  %s2 = inlined_call_operand.vmem [shape: f32[4], index: 2, kind: input, shape index: {}]
  %s3 = inlined_call_operand.hbm [shape: f32[2,4,2,128], index: 3, kind: output, shape index: {}]
  %s4 = sld [smem:[#allocation0]]
  $region34: #{tpu_custom_call.1} parent=0
    _
  %s6 = ssub.s32 1, %s4
  %s7 = scalar_select 0, %s6, %s4
  $region1: #{tpu_custom_call.1} parent=0
    #allocation2 [shape = 'u8[8192]{0}', space=vmem, size = 0x2000, scoped, tag = 'input window, operand 0, single buffered']
    #allocation3 [shape = 's32[1]{0}', space=sflag, size = 0x4, scoped, tag = 'scoped memory for tpu_custom_call.1']
    #allocation4 [shape = 's32[1]{0}', space=sflag, size = 0x4, scoped, tag = 'scoped memory for tpu_custom_call.1']
    #allocation5 [shape = 's32[1]{0}', space=sflag, size = 0x4, scoped, tag = 'scoped memory for tpu_custom_call.1']
    #allocation6 [shape = 's32[1]{0}', space=sflag, size = 0x4, scoped, tag = 'scoped memory for tpu_custom_call.1']
    #allocation7 [shape = 'u8[512]{0}', space=smem, size = 0x200, scoped, tag = 'input window, operand 1, single buffered']
    #allocation8 [shape = 'u8[512]{0}', space=smem, size = 0x200, scoped, tag = 'input window, operand 2, single buffered']
    #allocation9 [shape = 'u8[8192]{0}', space=vmem, size = 0x2000, scoped, tag = 'output window, operand 0, single buffered']
    %8 = vsyncpa [#allocation3], 0
    %9 = vsyncpa [#allocation5], 0
    %10 = vsyncpa [#allocation6], 0
    %11 = vsyncpa [#allocation4], 0
    // Predicated region
    $region2: #{tpu_custom_call.1} parent=1 // pred_check
      _
    $region3: #{tpu_custom_call.1} parent=1 // pred_check_branch
      %13 = sbr.rel (0) target = $region5
    $region4: #{tpu_custom_call.1} parent=1 // pred_region
      %15 = vsyncadd [#allocation3], 0
      %s16 = sshll.u32 %s0, 4
      %s17 = int_to_ptr.hbm [resolvable:$true] %s16
      %s18 = sshll.u32 [#allocation2], 4
      %s19 = int_to_ptr.vmem [resolvable:$true] %s18
      %24 = dma.hbm_to_vmem [thread:$0]  %s17, 256, %s19, [#allocation3], 32, 32, 2
    $region5: #{tpu_custom_call.1} parent=1 // pred_fallthru
      _
    // Predicated region
    $region6: #{tpu_custom_call.1} parent=1 // pred_check
      _
    $region7: #{tpu_custom_call.1} parent=1 // pred_check_branch
      %26 = sbr.rel (0) target = $region9
    $region8: #{tpu_custom_call.1} parent=1 // pred_region
      %28 = vsyncadd [#allocation5], 0
      %s30 = sshll.u32 %s1, 4
      %s31 = int_to_ptr.hbm [resolvable:$true] %s30
      %33 = dma.hbm_to_smem %s31, 16, [#allocation7], [#allocation5]
    $region9: #{tpu_custom_call.1} parent=1 // pred_fallthru
      _
    // Predicated region
    $region10: #{tpu_custom_call.1} parent=1 // pred_check
      _
    $region11: #{tpu_custom_call.1} parent=1 // pred_check_branch
      %35 = sbr.rel (0) target = $region13
    $region12: #{tpu_custom_call.1} parent=1 // pred_region
      %37 = vsyncadd [#allocation6], 0
      %s39 = sshll.u32 %s2, 4
      %s40 = int_to_ptr.vmem [resolvable:$true] %s39
      %42 = dma.vmem_to_smem %s40, 16, [#allocation8], [#allocation6]
    $region13: #{tpu_custom_call.1} parent=1 // pred_fallthru
      _
    // Predicated region
    $region14: #{tpu_custom_call.1} parent=1 // pred_check
      _
    $region15: #{tpu_custom_call.1} parent=1 // pred_check_branch
      %44 = sbr.rel (0) target = $region17
    $region16: #{tpu_custom_call.1} parent=1 // pred_region
      %46 = dma.done [#allocation3], 256
    $region17: #{tpu_custom_call.1} parent=1 // pred_fallthru
      _
    // Predicated region
    $region18: #{tpu_custom_call.1} parent=1 // pred_check
      _
    $region19: #{tpu_custom_call.1} parent=1 // pred_check_branch
      %48 = sbr.rel (0) target = $region21
    $region20: #{tpu_custom_call.1} parent=1 // pred_region
      %50 = dma.done [#allocation5], 16
    $region21: #{tpu_custom_call.1} parent=1 // pred_fallthru
      _
    // Predicated region
    $region22: #{tpu_custom_call.1} parent=1 // pred_check
      _
    $region23: #{tpu_custom_call.1} parent=1 // pred_check_branch
      %52 = sbr.rel (0) target = $region25
    $region24: #{tpu_custom_call.1} parent=1 // pred_region
      %54 = dma.done [#allocation6], 16
    $region25: #{tpu_custom_call.1} parent=1 // pred_fallthru
      _
    %55 = sfence
    %s56 = sld [smem:[#allocation7]]
    %v57 = vld [vmem:[#allocation2] sm:$0x3]
    %v58 = vld [vmem:[#allocation2 + $0x8] sm:$0x3]
    %v59 = vstv %s56
    %v60 = vmul.f32 %v59, %v57
    %v61 = vmul.f32 %v59, %v58
    %s62 = sld [smem:[#allocation7 + $0x1]]
    %s63 = scalar_lea.vmem [#allocation2], 2
    %v64 = vld [vmem:[%s63] sm:$0x3]
    %v65 = vld [vmem:[%s63 + $0x8] sm:$0x3]
    %v66 = vstv %s62
    %v67 = vmul.f32 %v66, %v64
    %v68 = vmul.f32 %v66, %v65
    %v69 = vadd.f32 %v60, %v67
    %v70 = vadd.f32 %v61, %v68
    %s71 = sld [smem:[#allocation7 + $0x2]]
    %s72 = scalar_lea.vmem [#allocation2], 4
    %v73 = vld [vmem:[%s72] sm:$0x3]
    %v74 = vld [vmem:[%s72 + $0x8] sm:$0x3]
    %v75 = vstv %s71
    %v76 = vmul.f32 %v75, %v73
    %v77 = vmul.f32 %v75, %v74
    %v78 = vadd.f32 %v69, %v76
    %v79 = vadd.f32 %v70, %v77
    %s80 = sld [smem:[#allocation7 + $0x3]]
    %s81 = scalar_lea.vmem [#allocation2], 6
    %v82 = vld [vmem:[%s81] sm:$0x3]
    %v83 = vld [vmem:[%s81 + $0x8] sm:$0x3]
    %v84 = vstv %s80
    %v85 = vmul.f32 %v84, %v82
    %v86 = vmul.f32 %v84, %v83
    %v87 = vadd.f32 %v78, %v85
    %v88 = vadd.f32 %v79, %v86
    %s89 = sld [smem:[#allocation8]]
    %v90 = vstv %s89
    %v91 = vadd.f32 %v87, %v90
    %v92 = vadd.f32 %v88, %v90
    %93 = vst [vmem:[#allocation9] sm:$0x3] %v91
    %94 = vst [vmem:[#allocation9 + $0x8] sm:$0x3] %v92
    %s95 = sld [smem:[#allocation7 + $0x4]]
    %v96 = vld [vmem:[#allocation2] sm:$0x3]
    %v97 = vld [vmem:[#allocation2 + $0x8] sm:$0x3]
    %v98 = vstv %s95
    %v99 = vmul.f32 %v98, %v96
    %v100 = vmul.f32 %v98, %v97
    %s101 = sld [smem:[#allocation7 + $0x5]]
    %v102 = vld [vmem:[%s63] sm:$0x3]
    %v103 = vld [vmem:[%s63 + $0x8] sm:$0x3]
    %v104 = vstv %s101
    %v105 = vmul.f32 %v104, %v102
    %v106 = vmul.f32 %v104, %v103
    %v107 = vadd.f32 %v99, %v105
    %v108 = vadd.f32 %v100, %v106
    %s109 = sld [smem:[#allocation7 + $0x6]]
    %v110 = vld [vmem:[%s72] sm:$0x3]
    %v111 = vld [vmem:[%s72 + $0x8] sm:$0x3]
    %v112 = vstv %s109
    %v113 = vmul.f32 %v112, %v110
    %v114 = vmul.f32 %v112, %v111
    %v115 = vadd.f32 %v107, %v113
    %v116 = vadd.f32 %v108, %v114
    %s117 = sld [smem:[#allocation7 + $0x7]]
    %v118 = vld [vmem:[%s81] sm:$0x3]
    %v119 = vld [vmem:[%s81 + $0x8] sm:$0x3]
    %v120 = vstv %s117
    %v121 = vmul.f32 %v120, %v118
    %v122 = vmul.f32 %v120, %v119
    %v123 = vadd.f32 %v115, %v121
    %v124 = vadd.f32 %v116, %v122
    %s125 = sld [smem:[#allocation8 + $0x1]]
    %v126 = vstv %s125
    %v127 = vadd.f32 %v123, %v126
    %v128 = vadd.f32 %v124, %v126
    %s129 = scalar_lea.vmem [#allocation9], 2
    %130 = vst [vmem:[%s129] sm:$0x3] %v127
    %131 = vst [vmem:[%s129 + $0x8] sm:$0x3] %v128
    %s132 = sld [smem:[#allocation7 + $0x8]]
    %v133 = vld [vmem:[#allocation2] sm:$0x3]
    %v134 = vld [vmem:[#allocation2 + $0x8] sm:$0x3]
    %v135 = vstv %s132
    %v136 = vmul.f32 %v135, %v133
    %v137 = vmul.f32 %v135, %v134
    %s138 = sld [smem:[#allocation7 + $0x9]]
    %v139 = vld [vmem:[%s63] sm:$0x3]
    %v140 = vld [vmem:[%s63 + $0x8] sm:$0x3]
    %v141 = vstv %s138
    %v142 = vmul.f32 %v141, %v139
    %v143 = vmul.f32 %v141, %v140
    %v144 = vadd.f32 %v136, %v142
    %v145 = vadd.f32 %v137, %v143
    %s146 = sld [smem:[#allocation7 + $0xa]]
    %v147 = vld [vmem:[%s72] sm:$0x3]
    %v148 = vld [vmem:[%s72 + $0x8] sm:$0x3]
    %v149 = vstv %s146
    %v150 = vmul.f32 %v149, %v147
    %v151 = vmul.f32 %v149, %v148
    %v152 = vadd.f32 %v144, %v150
    %v153 = vadd.f32 %v145, %v151
    %s154 = sld [smem:[#allocation7 + $0xb]]
    %v155 = vld [vmem:[%s81] sm:$0x3]
    %v156 = vld [vmem:[%s81 + $0x8] sm:$0x3]
    %v157 = vstv %s154
    %v158 = vmul.f32 %v157, %v155
    %v159 = vmul.f32 %v157, %v156
    %v160 = vadd.f32 %v152, %v158
    %v161 = vadd.f32 %v153, %v159
    %s162 = sld [smem:[#allocation8 + $0x2]]
    %v163 = vstv %s162
    %v164 = vadd.f32 %v160, %v163
    %v165 = vadd.f32 %v161, %v163
    %s166 = scalar_lea.vmem [#allocation9], 4
    %167 = vst [vmem:[%s166] sm:$0x3] %v164
    %168 = vst [vmem:[%s166 + $0x8] sm:$0x3] %v165
    %s169 = sld [smem:[#allocation7 + $0xc]]
    %v170 = vld [vmem:[#allocation2] sm:$0x3]
    %v171 = vld [vmem:[#allocation2 + $0x8] sm:$0x3]
    %v172 = vstv %s169
    %v173 = vmul.f32 %v172, %v170
    %v174 = vmul.f32 %v172, %v171
    %s175 = sld [smem:[#allocation7 + $0xd]]
    %v176 = vld [vmem:[%s63] sm:$0x3]
    %v177 = vld [vmem:[%s63 + $0x8] sm:$0x3]
    %v178 = vstv %s175
    %v179 = vmul.f32 %v178, %v176
    %v180 = vmul.f32 %v178, %v177
    %v181 = vadd.f32 %v173, %v179
    %v182 = vadd.f32 %v174, %v180
    %s183 = sld [smem:[#allocation7 + $0xe]]
    %v184 = vld [vmem:[%s72] sm:$0x3]
    %v185 = vld [vmem:[%s72 + $0x8] sm:$0x3]
    %v186 = vstv %s183
    %v187 = vmul.f32 %v186, %v184
    %v188 = vmul.f32 %v186, %v185
    %v189 = vadd.f32 %v181, %v187
    %v190 = vadd.f32 %v182, %v188
    %s191 = sld [smem:[#allocation7 + $0xf]]
    %v192 = vld [vmem:[%s81] sm:$0x3]
    %v193 = vld [vmem:[%s81 + $0x8] sm:$0x3]
    %v194 = vstv %s191
    %v195 = vmul.f32 %v194, %v192
    %v196 = vmul.f32 %v194, %v193
    %v197 = vadd.f32 %v189, %v195
    %v198 = vadd.f32 %v190, %v196
    %s199 = sld [smem:[#allocation8 + $0x3]]
    %v200 = vstv %s199
    %v201 = vadd.f32 %v197, %v200
    %v202 = vadd.f32 %v198, %v200
    %s203 = scalar_lea.vmem [#allocation9], 6
    %204 = vst [vmem:[%s203] sm:$0x3] %v201
    %205 = vst [vmem:[%s203 + $0x8] sm:$0x3] %v202
    // Predicated region
    $region26: #{tpu_custom_call.1} parent=1 // pred_check
      _
    $region27: #{tpu_custom_call.1} parent=1 // pred_check_branch
      %207 = sbr.rel (0) target = $region29
    $region28: #{tpu_custom_call.1} parent=1 // pred_region
      %209 = vsyncadd [#allocation4], 0
      %s210 = sshll.u32 [#allocation9], 4
      %s211 = int_to_ptr.vmem [resolvable:$true] %s210
      %s212 = sshll.u32 %s3, 4
      %s213 = int_to_ptr.hbm [resolvable:$true] %s212
      %218 = dma.vmem_to_hbm [thread:$0]  %s211, 256, %s213, [#allocation4], 32, 32, 2
    $region29: #{tpu_custom_call.1} parent=1 // pred_fallthru
      _
    // Predicated region
    $region30: #{tpu_custom_call.1} parent=1 // pred_check
      _
    $region31: #{tpu_custom_call.1} parent=1 // pred_check_branch
      %220 = sbr.rel (0) target = $region33
    $region32: #{tpu_custom_call.1} parent=1 // pred_region
      %222 = dma.done [#allocation4], 256
    $region33: #{tpu_custom_call.1} parent=1 // pred_fallthru
      _
    %223 = vsyncpa [#allocation3], 1
    %224 = vsyncpa [#allocation4], 1
    %225 = vsyncpa [#allocation5], 1
    %226 = vsyncpa [#allocation6], 1

</llo_original>
